<compile_context>
chip_gen: v5e
topology: v5e:2x2
jax: 0.10.0
libtpu: 0.0.40
codegen_flags: <defaults>
</compile_context>

<pallas_src>
import math
from typing import NamedTuple

import jax
import jax.numpy as jnp
from jax.experimental import pallas as pl
from jax.experimental.pallas import tpu as pltpu


STATESIZE = 8                                   # small synthetic state size
S8 = max(8, ((STATESIZE + 7) // 8) * 8)         # state dim padded to sublane multiple
H1, H2 = 256, 128                               # hidden sizes from the module
OUT_PAD = 128                                   # lane padding of the 2-wide output
TILE_M_MAX = 128                                # max rows per grid step


def actor_kernel(x_ref, w1_ref, b1_ref, w2_ref, b2_ref, w3_ref, b3_ref, o_ref):
    # layer 1: (tm, S8) @ (S8, 256) -> relu
    h1 = jnp.dot(x_ref[...], w1_ref[...], preferred_element_type=jnp.float32)
    h1 = jnp.maximum(h1 + b1_ref[...], 0.0)
    # layer 2: (tm, 256) @ (256, 128) -> relu
    h2 = jnp.dot(h1, w2_ref[...], preferred_element_type=jnp.float32)
    h2 = jnp.maximum(h2 + b2_ref[...], 0.0)
    # layer 3: (tm, 128) @ (128, OUT_PAD)
    y = jnp.dot(h2, w3_ref[...], preferred_element_type=jnp.float32) + b3_ref[...]
    # column 0 -> mu (identity); column 1 -> sigma = stable_softplus(y) + 0.001
    sp = jnp.maximum(y, 0.0) + jnp.log1p(jnp.exp(-jnp.abs(y)))
    col = jax.lax.broadcasted_iota(jnp.int32, y.shape, 1)
    o_ref[...] = jnp.where(col == 1, sp + 0.001, y)


def pack_params(params):
    """One-time packing: PyTorch (out,in) weights -> padded (in,out) tiles,
    biases replicated to (TILE_M_MAX, N) slabs.  Do NOT call per forward."""
    w1, b1, w2, b2, w3, b3 = params
    w1_p = jnp.zeros((S8, H1), jnp.float32).at[:STATESIZE, :].set(w1.T)
    w2_p = jnp.asarray(w2.T, jnp.float32)                              # (256, 128)
    w3_p = jnp.zeros((H2, OUT_PAD), jnp.float32).at[:, :2].set(w3.T)   # (128, 128)
    b1_p = jnp.tile(b1.reshape(1, H1).astype(jnp.float32), (TILE_M_MAX, 1))
    b2_p = jnp.tile(b2.reshape(1, H2).astype(jnp.float32), (TILE_M_MAX, 1))
    b3_row = jnp.zeros((1, OUT_PAD), jnp.float32).at[0, :2].set(b3)
    b3_p = jnp.tile(b3_row, (TILE_M_MAX, 1))
    return (w1_p, b1_p, w2_p, b2_p, w3_p, b3_p)


def _tile_rows(batch):
    """Row tile: round small batches up to a sublane multiple, cap at 128."""
    if batch >= TILE_M_MAX:
        return TILE_M_MAX
    return max(8, ((batch + 7) // 8) * 8)


def actor_forward_batch(xb, packed):
    """xb: (B, STATESIZE) float32.  Returns (mu, sigma), each (B,)."""
    w1_p, b1_p, w2_p, b2_p, w3_p, b3_p = packed
    B = xb.shape[0]
    tm = _tile_rows(B)
    m_pad = pl.cdiv(B, tm) * tm
    x_pad = jnp.zeros((m_pad, S8), jnp.float32).at[:B, :STATESIZE].set(
        xb.astype(jnp.float32))

    out = pl.pallas_call(
        actor_kernel,
        out_shape=jax.ShapeDtypeStruct((m_pad, OUT_PAD), jnp.float32),
        grid=(m_pad // tm,),
        in_specs=[
            pl.BlockSpec((tm, S8), lambda i: (i, 0)),        # x: tiled over batch
            pl.BlockSpec((S8, H1), lambda i: (0, 0)),        # w1: resident
            pl.BlockSpec((tm, H1), lambda i: (0, 0)),        # b1: resident slab slice
            pl.BlockSpec((H1, H2), lambda i: (0, 0)),        # w2: resident
            pl.BlockSpec((tm, H2), lambda i: (0, 0)),        # b2: resident slab slice
            pl.BlockSpec((H2, OUT_PAD), lambda i: (0, 0)),   # w3: resident
            pl.BlockSpec((tm, OUT_PAD), lambda i: (0, 0)),   # b3: resident slab slice
        ],
        out_specs=pl.BlockSpec((tm, OUT_PAD), lambda i: (i, 0)),
        compiler_params=pltpu.CompilerParams(
            dimension_semantics=("parallel",)),
    )(x_pad, w1_p, b1_p, w2_p, b2_p, w3_p, b3_p)

    return out[:B, 0], out[:B, 1]


def actor_forward(x, packed):
    """Single-state path matching the module: x (STATESIZE,) -> scalar (mu, sigma)."""
    mu, sigma = actor_forward_batch(x.reshape(1, -1), packed)
    return mu[0], sigma[0]


class Normal(NamedTuple):
    # TODO(synk): torch.distributions.Normal has no Pallas/JAX-core equivalent;
    # we return the distribution parameters instead.
    loc: jax.Array
    scale: jax.Array


def init_params(key, statesize):
    """Deterministic kaiming_uniform_ weights (PyTorch layout (out,in)), zero biases."""
    def kaiming(k, out_f, in_f):
        bound = math.sqrt(6.0 / in_f)   # gain=sqrt(2), a=0, fan_in mode
        return jax.random.uniform(k, (out_f, in_f), jnp.float32, -bound, bound)

    k1, k2, k3 = jax.random.split(key, 3)
    w1 = kaiming(k1, H1, statesize)
    w2 = kaiming(k2, H2, H1)
    w3 = kaiming(k3, 2, H2)
    b1 = jnp.zeros((H1,), jnp.float32)
    b2 = jnp.zeros((H2,), jnp.float32)
    b3 = jnp.zeros((2,), jnp.float32)
    return (w1, b1, w2, b2, w3, b3)


def reference_forward_batch(xb, params):
    w1, b1, w2, b2, w3, b3 = params
    hp = jax.lax.Precision.HIGHEST
    y = jnp.maximum(jnp.dot(xb, w1.T, precision=hp) + b1, 0.0)
    y = jnp.maximum(jnp.dot(y, w2.T, precision=hp) + b2, 0.0)
    y = jnp.dot(y, w3.T, precision=hp) + b3
    mu = y[:, 0]
    sigma = jax.nn.softplus(y[:, 1]) + 0.001
    return mu, sigma


if __name__ == "__main__":
    key = jax.random.PRNGKey(0)
    k_param, k_x, k_xb = jax.random.split(key, 3)

    params = init_params(k_param, STATESIZE)
    packed = pack_params(params)                      # one-time packing (not per call)
    packed = jax.block_until_ready(packed)

    fwd_single = jax.jit(actor_forward)
    fwd_batch = jax.jit(actor_forward_batch)

    # single-state path (matches the original module's forward semantics)
    x = jax.random.normal(k_x, (STATESIZE,), jnp.float32)
    mu, sigma = fwd_single(x, packed)
    jax.block_until_ready((mu, sigma))
    dist = Normal(loc=mu, scale=sigma)

    mu_ref, sigma_ref = reference_forward_batch(x.reshape(1, -1), params)
    assert jnp.allclose(mu, mu_ref[0], atol=1e-4, rtol=1e-4), (mu, mu_ref[0])
    assert jnp.allclose(sigma, sigma_ref[0], atol=1e-4, rtol=1e-4), (sigma, sigma_ref[0])
    assert float(dist.scale) > 0.0

    # batched rollout path: B=50 states at once (single 56-row tile, one grid step)
    B = 50
    xb = jax.random.normal(k_xb, (B, STATESIZE), jnp.float32)
    mu_b, sigma_b = fwd_batch(xb, packed)
    jax.block_until_ready((mu_b, sigma_b))
    mu_bref, sigma_bref = reference_forward_batch(xb, params)
    assert jnp.allclose(mu_b, mu_bref, atol=1e-4, rtol=1e-4)
    assert jnp.allclose(sigma_b, sigma_bref, atol=1e-4, rtol=1e-4)
    assert bool(jnp.all(sigma_b > 0.0))

    # larger batch path: exercises the multi-step grid with resident weights
    B2 = 300
    xb2 = jax.random.normal(k_xb, (B2, STATESIZE), jnp.float32)
    mu_b2, sigma_b2 = fwd_batch(xb2, packed)
    jax.block_until_ready((mu_b2, sigma_b2))
    mu_b2ref, sigma_b2ref = reference_forward_batch(xb2, params)
    assert jnp.allclose(mu_b2, mu_b2ref, atol=1e-4, rtol=1e-4)
    assert jnp.allclose(sigma_b2, sigma_b2ref, atol=1e-4, rtol=1e-4)

    print("KERNEL_OK")
</pallas_src>

<mosaic_0001>
module attributes {stable_mosaic.version = 11 : i64} {
  func.func @actor_kernel(%arg0: i32, %arg1: memref<8x8xf32, #tpu.memory_space<vmem>>, %arg2: memref<8x256xf32, #tpu.memory_space<vmem>>, %arg3: memref<8x256xf32, #tpu.memory_space<vmem>>, %arg4: memref<256x128xf32, #tpu.memory_space<vmem>>, %arg5: memref<8x128xf32, #tpu.memory_space<vmem>>, %arg6: memref<128x128xf32, #tpu.memory_space<vmem>>, %arg7: memref<8x128xf32, #tpu.memory_space<vmem>>, %arg8: memref<8x128xf32, #tpu.memory_space<vmem>>) attributes {dimension_semantics = [#tpu.dimension_semantics<parallel>], iteration_bounds = array<i64: 1>, scalar_prefetch = 0 : i64, scratch_operands = 0 : i64, tpu.core_type = #tpu.core_type<tc>, window_params = [{transform_indices = @transform_0, window_bounds = array<i64: 8, 8>}, {pipeline_mode = #tpu.pipeline_mode<synchronous>, transform_indices = @transform_1, window_bounds = array<i64: 8, 256>}, {transform_indices = @transform_2, window_bounds = array<i64: 8, 256>}, {pipeline_mode = #tpu.pipeline_mode<synchronous>, transform_indices = @transform_3, window_bounds = array<i64: 256, 128>}, {transform_indices = @transform_4, window_bounds = array<i64: 8, 128>}, {pipeline_mode = #tpu.pipeline_mode<synchronous>, transform_indices = @transform_5, window_bounds = array<i64: 128, 128>}, {transform_indices = @transform_6, window_bounds = array<i64: 8, 128>}, {transform_indices = @transform_7, window_bounds = array<i64: 8, 128>}]} {
    %c0 = arith.constant 0 : index
    %c0_0 = arith.constant 0 : index
    %0 = vector.load %arg1[%c0, %c0_0] : memref<8x8xf32, #tpu.memory_space<vmem>>, vector<8x8xf32>
    %c0_1 = arith.constant 0 : index
    %c0_2 = arith.constant 0 : index
    %1 = vector.load %arg2[%c0_1, %c0_2] : memref<8x256xf32, #tpu.memory_space<vmem>>, vector<8x256xf32>
    %cst = arith.constant dense<0.000000e+00> : vector<8x256xf32>
    %2 = tpu.matmul %0, %1, %cst {dimension_numbers = #tpu.dot_dimension_numbers<[1], [0], [0], [1], [0, 0, 1, 1], [], []>} : vector<8x8xf32>, vector<8x256xf32>, vector<8x256xf32> -> vector<8x256xf32>
    %c0_3 = arith.constant 0 : index
    %c0_4 = arith.constant 0 : index
    %3 = vector.load %arg3[%c0_3, %c0_4] : memref<8x256xf32, #tpu.memory_space<vmem>>, vector<8x256xf32>
    %4 = arith.addf %2, %3 : vector<8x256xf32>
    %cst_5 = arith.constant 0.000000e+00 : f32
    %5 = vector.broadcast %cst_5 : f32 to vector<8x256xf32>
    %6 = arith.maximumf %4, %5 : vector<8x256xf32>
    %c0_6 = arith.constant 0 : index
    %c0_7 = arith.constant 0 : index
    %7 = vector.load %arg4[%c0_6, %c0_7] : memref<256x128xf32, #tpu.memory_space<vmem>>, vector<256x128xf32>
    %cst_8 = arith.constant dense<0.000000e+00> : vector<8x128xf32>
    %8 = tpu.matmul %6, %7, %cst_8 {dimension_numbers = #tpu.dot_dimension_numbers<[1], [0], [0], [1], [0, 0, 1, 1], [], []>} : vector<8x256xf32>, vector<256x128xf32>, vector<8x128xf32> -> vector<8x128xf32>
    %c0_9 = arith.constant 0 : index
    %c0_10 = arith.constant 0 : index
    %9 = vector.load %arg5[%c0_9, %c0_10] : memref<8x128xf32, #tpu.memory_space<vmem>>, vector<8x128xf32>
    %10 = arith.addf %8, %9 : vector<8x128xf32>
    %cst_11 = arith.constant 0.000000e+00 : f32
    %11 = vector.broadcast %cst_11 : f32 to vector<8x128xf32>
    %12 = arith.maximumf %10, %11 : vector<8x128xf32>
    %c0_12 = arith.constant 0 : index
    %c0_13 = arith.constant 0 : index
    %13 = vector.load %arg6[%c0_12, %c0_13] : memref<128x128xf32, #tpu.memory_space<vmem>>, vector<128x128xf32>
    %cst_14 = arith.constant dense<0.000000e+00> : vector<8x128xf32>
    %14 = tpu.matmul %12, %13, %cst_14 {dimension_numbers = #tpu.dot_dimension_numbers<[1], [0], [0], [1], [0, 0, 1, 1], [], []>} : vector<8x128xf32>, vector<128x128xf32>, vector<8x128xf32> -> vector<8x128xf32>
    %c0_15 = arith.constant 0 : index
    %c0_16 = arith.constant 0 : index
    %15 = vector.load %arg7[%c0_15, %c0_16] : memref<8x128xf32, #tpu.memory_space<vmem>>, vector<8x128xf32>
    %16 = arith.addf %14, %15 : vector<8x128xf32>
    %cst_17 = arith.constant 0.000000e+00 : f32
    %17 = vector.broadcast %cst_17 : f32 to vector<8x128xf32>
    %18 = arith.maximumf %16, %17 : vector<8x128xf32>
    %19 = math.absf %16 : vector<8x128xf32>
    %cst_18 = arith.constant 0.000000e+00 : f32
    %20 = vector.broadcast %cst_18 : f32 to vector<8x128xf32>
    %21 = arith.subf %20, %19 : vector<8x128xf32>
    %22 = math.exp %21 : vector<8x128xf32>
    %23 = math.log1p %22 : vector<8x128xf32>
    %24 = arith.addf %18, %23 : vector<8x128xf32>
    %25 = tpu.iota {dimensions = array<i32: 1>} : vector<8x128xi32>
    %c1_i32 = arith.constant 1 : i32
    %26 = vector.broadcast %c1_i32 : i32 to vector<8x128xi32>
    %27 = arith.cmpi eq, %25, %26 : vector<8x128xi32>
    %cst_19 = arith.constant 1.000000e-03 : f32
    %28 = vector.broadcast %cst_19 : f32 to vector<8x128xf32>
    %29 = arith.addf %24, %28 : vector<8x128xf32>
    %30 = arith.select %27, %29, %16 : vector<8x128xi1>, vector<8x128xf32>
    %c0_20 = arith.constant 0 : index
    %c0_21 = arith.constant 0 : index
    %31 = vector.load %arg8[%c0_20, %c0_21] : memref<8x128xf32, #tpu.memory_space<vmem>>, vector<8x128xf32>
    tpu.vector_store %arg8[%c0_20, %c0_21], %30 {strides = array<i32>} : memref<8x128xf32, #tpu.memory_space<vmem>>, vector<8x128xf32>,
    return
  }
  func.func @transform_0(%arg0: i32) -> (i32, i32) {
    %c0_i32 = arith.constant 0 : i32
    %c0_i32_0 = arith.constant 0 : i32
    return %arg0, %c0_i32 : i32, i32
  }
  func.func @transform_1(%arg0: i32) -> (i32, i32) {
    %c0_i32 = arith.constant 0 : i32
    %c0_i32_0 = arith.constant 0 : i32
    %c0_i32_1 = arith.constant 0 : i32
    return %c0_i32, %c0_i32_0 : i32, i32
  }
  func.func @transform_2(%arg0: i32) -> (i32, i32) {
    %c0_i32 = arith.constant 0 : i32
    %c0_i32_0 = arith.constant 0 : i32
    %c0_i32_1 = arith.constant 0 : i32
    return %c0_i32, %c0_i32_0 : i32, i32
  }
  func.func @transform_3(%arg0: i32) -> (i32, i32) {
    %c0_i32 = arith.constant 0 : i32
    %c0_i32_0 = arith.constant 0 : i32
    %c0_i32_1 = arith.constant 0 : i32
    return %c0_i32, %c0_i32_0 : i32, i32
  }
  func.func @transform_4(%arg0: i32) -> (i32, i32) {
    %c0_i32 = arith.constant 0 : i32
    %c0_i32_0 = arith.constant 0 : i32
    %c0_i32_1 = arith.constant 0 : i32
    return %c0_i32, %c0_i32_0 : i32, i32
  }
  func.func @transform_5(%arg0: i32) -> (i32, i32) {
    %c0_i32 = arith.constant 0 : i32
    %c0_i32_0 = arith.constant 0 : i32
    %c0_i32_1 = arith.constant 0 : i32
    return %c0_i32, %c0_i32_0 : i32, i32
  }
  func.func @transform_6(%arg0: i32) -> (i32, i32) {
    %c0_i32 = arith.constant 0 : i32
    %c0_i32_0 = arith.constant 0 : i32
    %c0_i32_1 = arith.constant 0 : i32
    return %c0_i32, %c0_i32_0 : i32, i32
  }
  func.func @transform_7(%arg0: i32) -> (i32, i32) {
    %c0_i32 = arith.constant 0 : i32
    %c0_i32_0 = arith.constant 0 : i32
    return %arg0, %c0_i32 : i32, i32
  }
}

</mosaic_0001>

<llo_original>
// kernel: actor_forward.1
$region0: #{actor_forward.1}
  #allocation0 [shape = 'u32[]', space=smem, size = 0x4, offset = 0x4, fixed_abs, tag = 'smem constant byte address 0x4 - core index']
  #allocation1 [shape = 'u32[72,128]{1,0:T(1,128)}', space=vmem, size = 0x9000, scoped, tag = 'internal scratch']
  %s0 = inlined_call_operand.vmem [shape: f32[8,8], index: 0, kind: input, shape index: {}]
  %s1 = inlined_call_operand.hbm [shape: f32[8,256], index: 1, kind: input, shape index: {}]
  %s2 = inlined_call_operand.hbm [shape: f32[128,256], index: 2, kind: input, shape index: {}]
  %s3 = inlined_call_operand.hbm [shape: f32[256,128], index: 3, kind: input, shape index: {}]
  %s4 = inlined_call_operand.hbm [shape: f32[128,128], index: 4, kind: input, shape index: {}]
  %s5 = inlined_call_operand.hbm [shape: f32[128,128], index: 5, kind: input, shape index: {}]
  %s6 = inlined_call_operand.hbm [shape: f32[128,128], index: 6, kind: input, shape index: {}]
  %s7 = inlined_call_operand.vmem [shape: f32[8,128], index: 7, kind: output, shape index: {}]
  %s8 = sld [smem:[#allocation0]]
  $region62: #{actor_forward.1} parent=0
    _
  %s10 = ssub.s32 1, %s8
  %s11 = scalar_select 0, %s10, %s8
  $region1: #{actor_forward.1} parent=0
    #allocation2 [shape = 'u8[8192]{0}', space=vmem, size = 0x2000, scoped, tag = 'input window, operand 1, single buffered']
    #allocation3 [shape = 's32[1]{0}', space=sflag, size = 0x4, scoped, tag = 'scoped memory for actor_forward.1']
    #allocation4 [shape = 'u8[8192]{0}', space=vmem, size = 0x2000, scoped, tag = 'input window, operand 2, single buffered']
    #allocation5 [shape = 's32[1]{0}', space=sflag, size = 0x4, scoped, tag = 'scoped memory for actor_forward.1']
    #allocation6 [shape = 'u8[131072]{0}', space=vmem, size = 0x20000, scoped, tag = 'input window, operand 3, single buffered']
    #allocation7 [shape = 'u8[4096]{0}', space=vmem, size = 0x1000, scoped, tag = 'input window, operand 4, single buffered']
    #allocation8 [shape = 's32[1]{0}', space=sflag, size = 0x4, scoped, tag = 'scoped memory for actor_forward.1']
    #allocation9 [shape = 'u8[65536]{0}', space=vmem, size = 0x10000, scoped, tag = 'input window, operand 5, single buffered']
    #allocation10 [shape = 'u8[4096]{0}', space=vmem, size = 0x1000, scoped, tag = 'input window, operand 6, single buffered']
    #allocation11 [shape = 's32[1]{0}', space=sflag, size = 0x4, scoped, tag = 'scoped memory for actor_forward.1']
    %12 = vsyncpa [#allocation3], 0
    %13 = vsyncpa [#allocation5], 0
    %14 = vsyncpa [#allocation8], 0
    %15 = vsyncpa [#allocation11], 0
    // Predicated region
    $region2: #{actor_forward.1} parent=1 // pred_check
      _
    $region3: #{actor_forward.1} parent=1 // pred_check_branch
      %17 = sbr.rel (0) target = $region5
    $region4: #{actor_forward.1} parent=1 // pred_region
      _
    $region5: #{actor_forward.1} parent=1 // pred_fallthru
      _
    // Predicated region
    $region6: #{actor_forward.1} parent=1 // pred_check
      _
    $region7: #{actor_forward.1} parent=1 // pred_check_branch
      %19 = sbr.rel (0) target = $region9
    $region8: #{actor_forward.1} parent=1 // pred_region
      %21 = vsyncadd [#allocation3], 0
      %s23 = sshll.u32 %s1, 4
      %s24 = int_to_ptr.hbm [resolvable:$true] %s23
      %s25 = sshll.u32 [#allocation2], 4
      %s26 = int_to_ptr.vmem [resolvable:$true] %s25
      %28 = dma.hbm_to_vmem [thread:$0]  %s24, 256, %s26, [#allocation3]
    $region9: #{actor_forward.1} parent=1 // pred_fallthru
      _
    // Predicated region
    $region10: #{actor_forward.1} parent=1 // pred_check
      _
    $region11: #{actor_forward.1} parent=1 // pred_check_branch
      %30 = sbr.rel (0) target = $region13
    $region12: #{actor_forward.1} parent=1 // pred_region
      %32 = vsyncadd [#allocation5], 0
      %s34 = sshll.u32 %s2, 4
      %s35 = int_to_ptr.hbm [resolvable:$true] %s34
      %s36 = sshll.u32 [#allocation4], 4
      %s37 = int_to_ptr.vmem [resolvable:$true] %s36
      %39 = dma.hbm_to_vmem [thread:$0]  %s35, 256, %s37, [#allocation5]
    $region13: #{actor_forward.1} parent=1 // pred_fallthru
      _
    // Predicated region
    $region14: #{actor_forward.1} parent=1 // pred_check
      _
    $region15: #{actor_forward.1} parent=1 // pred_check_branch
      %41 = sbr.rel (0) target = $region17
    $region16: #{actor_forward.1} parent=1 // pred_region
      %43 = vsyncadd [#allocation5], 0
      %s44 = sshll.u32 %s3, 4
      %s45 = int_to_ptr.hbm [resolvable:$true] %s44
      %s46 = sshll.u32 [#allocation6], 4
      %s47 = int_to_ptr.vmem [resolvable:$true] %s46
      %52 = dma.hbm_to_vmem [thread:$0]  %s45, 4096, %s47, [#allocation5], 128, 128, 8
    $region17: #{actor_forward.1} parent=1 // pred_fallthru
      _
    // Predicated region
    $region18: #{actor_forward.1} parent=1 // pred_check
      _
    $region19: #{actor_forward.1} parent=1 // pred_check_branch
      %54 = sbr.rel (0) target = $region21
    $region20: #{actor_forward.1} parent=1 // pred_region
      %56 = vsyncadd [#allocation8], 0
      %s58 = sshll.u32 %s4, 4
      %s59 = int_to_ptr.hbm [resolvable:$true] %s58
      %s60 = sshll.u32 [#allocation7], 4
      %s61 = int_to_ptr.vmem [resolvable:$true] %s60
      %63 = dma.hbm_to_vmem [thread:$0]  %s59, 128, %s61, [#allocation8]
    $region21: #{actor_forward.1} parent=1 // pred_fallthru
      _
    // Predicated region
    $region22: #{actor_forward.1} parent=1 // pred_check
      _
    $region23: #{actor_forward.1} parent=1 // pred_check_branch
      %65 = sbr.rel (0) target = $region25
    $region24: #{actor_forward.1} parent=1 // pred_region
      %67 = vsyncadd [#allocation8], 0
      %s68 = sshll.u32 %s5, 4
      %s69 = int_to_ptr.hbm [resolvable:$true] %s68
      %s70 = sshll.u32 [#allocation9], 4
      %s71 = int_to_ptr.vmem [resolvable:$true] %s70
      %76 = dma.hbm_to_vmem [thread:$0]  %s69, 2048, %s71, [#allocation8], 128, 128, 8
    $region25: #{actor_forward.1} parent=1 // pred_fallthru
      _
    // Predicated region
    $region26: #{actor_forward.1} parent=1 // pred_check
      _
    $region27: #{actor_forward.1} parent=1 // pred_check_branch
      %78 = sbr.rel (0) target = $region29
    $region28: #{actor_forward.1} parent=1 // pred_region
      %80 = vsyncadd [#allocation11], 0
      %s82 = sshll.u32 %s6, 4
      %s83 = int_to_ptr.hbm [resolvable:$true] %s82
      %s84 = sshll.u32 [#allocation10], 4
      %s85 = int_to_ptr.vmem [resolvable:$true] %s84
      %87 = dma.hbm_to_vmem [thread:$0]  %s83, 128, %s85, [#allocation11]
    $region29: #{actor_forward.1} parent=1 // pred_fallthru
      _
    // Predicated region
    $region30: #{actor_forward.1} parent=1 // pred_check
      _
    $region31: #{actor_forward.1} parent=1 // pred_check_branch
      %89 = sbr.rel (0) target = $region33
    $region32: #{actor_forward.1} parent=1 // pred_region
      %91 = dma.done [#allocation3], 256
    $region33: #{actor_forward.1} parent=1 // pred_fallthru
      _
    // Predicated region
    $region34: #{actor_forward.1} parent=1 // pred_check
      _
    $region35: #{actor_forward.1} parent=1 // pred_check_branch
      %93 = sbr.rel (0) target = $region37
    $region36: #{actor_forward.1} parent=1 // pred_region
      %95 = dma.done [#allocation5], 256
    $region37: #{actor_forward.1} parent=1 // pred_fallthru
      _
    // Predicated region
    $region38: #{actor_forward.1} parent=1 // pred_check
      _
    $region39: #{actor_forward.1} parent=1 // pred_check_branch
      %97 = sbr.rel (0) target = $region41
    $region40: #{actor_forward.1} parent=1 // pred_region
      %99 = dma.done [#allocation5], 4096
    $region41: #{actor_forward.1} parent=1 // pred_fallthru
      _
    // Predicated region
    $region42: #{actor_forward.1} parent=1 // pred_check
      _
    $region43: #{actor_forward.1} parent=1 // pred_check_branch
      %101 = sbr.rel (0) target = $region45
    $region44: #{actor_forward.1} parent=1 // pred_region
      %103 = dma.done [#allocation8], 128
    $region45: #{actor_forward.1} parent=1 // pred_fallthru
      _
    // Predicated region
    $region46: #{actor_forward.1} parent=1 // pred_check
      _
    $region47: #{actor_forward.1} parent=1 // pred_check_branch
      %105 = sbr.rel (0) target = $region49
    $region48: #{actor_forward.1} parent=1 // pred_region
      %107 = dma.done [#allocation8], 2048
    $region49: #{actor_forward.1} parent=1 // pred_fallthru
      _
    // Predicated region
    $region50: #{actor_forward.1} parent=1 // pred_check
      _
    $region51: #{actor_forward.1} parent=1 // pred_check_branch
      %109 = sbr.rel (0) target = $region53
    $region52: #{actor_forward.1} parent=1 // pred_region
      %111 = dma.done [#allocation11], 128
    $region53: #{actor_forward.1} parent=1 // pred_fallthru
      _
    %v112 = vld [vmem:[%s0] sm:$0xff]
    %v113 = vld [vmem:[#allocation2] sm:$0xff]
    %v114 = vld [vmem:[#allocation2 + $0x8] sm:$0xff]
    %v115 = vld [vmem:[#allocation4] sm:$0xff]
    %v116 = vld [vmem:[#allocation4 + $0x8] sm:$0xff]
    %vm117 = vcmask 64512
    %v119 = vsel %vm117, %v112, 0
    %121 = vmatpush.msra.mxu0 0.0
    %122 = vmatpush.msra.mxu0 0.0
    %123 = vmatpush.msra.mxu0 0.0
    %124 = vmatpush.msra.mxu0 0.0
    %125 = vmatpush.msra.mxu0 0.0
    %126 = vmatpush.msra.mxu0 0.0
    %127 = vmatpush.msra.mxu0 0.0
    %128 = vmatpush.msra.mxu0 0.0
    %129 = vmatpush.msra.mxu0 0.0
    %130 = vmatpush.msra.mxu0 0.0
    %131 = vmatpush.msra.mxu0 0.0
    %132 = vmatpush.msra.mxu0 0.0
    %133 = vmatpush.msra.mxu0 0.0
    %134 = vmatpush.msra.mxu0 0.0
    %135 = vmatpush.msra.mxu0 0.0
    %136 = vmatpush.msra.mxu0 %v113
    %137 = vmatmul.f32.gmra.mxu0 %v119
    %v138 = vpop.f32.mrf.mxu0
    %v139 = vadd.f32 %v115, %v138
    %140 = vdwg.mxu0
    %141 = vmatpush.msra.mxu0 0.0
    %142 = vmatpush.msra.mxu0 0.0
    %143 = vmatpush.msra.mxu0 0.0
    %144 = vmatpush.msra.mxu0 0.0
    %145 = vmatpush.msra.mxu0 0.0
    %146 = vmatpush.msra.mxu0 0.0
    %147 = vmatpush.msra.mxu0 0.0
    %148 = vmatpush.msra.mxu0 0.0
    %149 = vmatpush.msra.mxu0 0.0
    %150 = vmatpush.msra.mxu0 0.0
    %151 = vmatpush.msra.mxu0 0.0
    %152 = vmatpush.msra.mxu0 0.0
    %153 = vmatpush.msra.mxu0 0.0
    %154 = vmatpush.msra.mxu0 0.0
    %155 = vmatpush.msra.mxu0 0.0
    %156 = vmatpush.msra.mxu0 %v114
    %157 = vmatmul.f32.gmra.mxu0 %v119
    %v158 = vpop.f32.mrf.mxu0
    %v159 = vadd.f32 %v116, %v158
    %160 = vdwg.mxu0
    %v161 = vmax.f32 %v139, 0.0
    %v162 = vmax.f32 %v159, 0.0
    %v163 = vld [vmem:[#allocation6] sm:$0xff]
    %v164 = vld [vmem:[#allocation6 + $0x8] sm:$0xff]
    %v165 = vld [vmem:[#allocation6 + $0x10] sm:$0xff]
    %v166 = vld [vmem:[#allocation6 + $0x18] sm:$0xff]
    %v167 = vld [vmem:[#allocation6 + $0x20] sm:$0xff]
    %v168 = vld [vmem:[#allocation6 + $0x28] sm:$0xff]
    %v169 = vld [vmem:[#allocation6 + $0x30] sm:$0xff]
    %v170 = vld [vmem:[#allocation6 + $0x38] sm:$0xff]
    %v171 = vld [vmem:[#allocation6 + $0x40] sm:$0xff]
    %v172 = vld [vmem:[#allocation6 + $0x48] sm:$0xff]
    %v173 = vld [vmem:[#allocation6 + $0x50] sm:$0xff]
    %v174 = vld [vmem:[#allocation6 + $0x58] sm:$0xff]
    %v175 = vld [vmem:[#allocation6 + $0x60] sm:$0xff]
    %v176 = vld [vmem:[#allocation6 + $0x68] sm:$0xff]
    %v177 = vld [vmem:[#allocation6 + $0x70] sm:$0xff]
    %v178 = vld [vmem:[#allocation6 + $0x78] sm:$0xff]
    %v179 = vld [vmem:[#allocation6 + $0x80] sm:$0xff]
    %v180 = vld [vmem:[#allocation6 + $0x88] sm:$0xff]
    %v181 = vld [vmem:[#allocation6 + $0x90] sm:$0xff]
    %v182 = vld [vmem:[#allocation6 + $0x98] sm:$0xff]
    %v183 = vld [vmem:[#allocation6 + $0xa0] sm:$0xff]
    %v184 = vld [vmem:[#allocation6 + $0xa8] sm:$0xff]
    %v185 = vld [vmem:[#allocation6 + $0xb0] sm:$0xff]
    %v186 = vld [vmem:[#allocation6 + $0xb8] sm:$0xff]
    %v187 = vld [vmem:[#allocation6 + $0xc0] sm:$0xff]
    %v188 = vld [vmem:[#allocation6 + $0xc8] sm:$0xff]
    %v189 = vld [vmem:[#allocation6 + $0xd0] sm:$0xff]
    %v190 = vld [vmem:[#allocation6 + $0xd8] sm:$0xff]
    %v191 = vld [vmem:[#allocation6 + $0xe0] sm:$0xff]
    %v192 = vld [vmem:[#allocation6 + $0xe8] sm:$0xff]
    %v193 = vld [vmem:[#allocation6 + $0xf0] sm:$0xff]
    %v194 = vld [vmem:[#allocation6 + $0xf8] sm:$0xff]
    %v195 = vld [vmem:[#allocation7] sm:$0xff]
    %196 = vmatpush.msra.mxu0 %v178
    %197 = vmatpush.msra.mxu0 %v177
    %198 = vmatpush.msra.mxu0 %v176
    %199 = vmatpush.msra.mxu0 %v175
    %200 = vmatpush.msra.mxu0 %v174
    %201 = vmatpush.msra.mxu0 %v173
    %202 = vmatpush.msra.mxu0 %v172
    %203 = vmatpush.msra.mxu0 %v171
    %204 = vmatpush.msra.mxu0 %v170
    %205 = vmatpush.msra.mxu0 %v169
    %206 = vmatpush.msra.mxu0 %v168
    %207 = vmatpush.msra.mxu0 %v167
    %208 = vmatpush.msra.mxu0 %v166
    %209 = vmatpush.msra.mxu0 %v165
    %210 = vmatpush.msra.mxu0 %v164
    %211 = vmatpush.msra.mxu0 %v163
    %212 = vmatmul.f32.gmra.mxu0 %v161
    %v213 = vpop.f32.mrf.mxu0
    %v214 = vadd.f32 %v195, %v213
    %215 = vdwg.mxu0
    %216 = vmatpush.msra.mxu0 %v194
    %217 = vmatpush.msra.mxu0 %v193
    %218 = vmatpush.msra.mxu0 %v192
    %219 = vmatpush.msra.mxu0 %v191
    %220 = vmatpush.msra.mxu0 %v190
    %221 = vmatpush.msra.mxu0 %v189
    %222 = vmatpush.msra.mxu0 %v188
    %223 = vmatpush.msra.mxu0 %v187
    %224 = vmatpush.msra.mxu0 %v186
    %225 = vmatpush.msra.mxu0 %v185
    %226 = vmatpush.msra.mxu0 %v184
    %227 = vmatpush.msra.mxu0 %v183
    %228 = vmatpush.msra.mxu0 %v182
    %229 = vmatpush.msra.mxu0 %v181
    %230 = vmatpush.msra.mxu0 %v180
    %231 = vmatpush.msra.mxu0 %v179
    %232 = vmatmul.f32.gmra.mxu0 %v162
    %v233 = vpop.f32.mrf.mxu0
    %v234 = vadd.f32 %v214, %v233
    %235 = vdwg.mxu0
    %v236 = vmax.f32 %v234, 0.0
    %v237 = vld [vmem:[#allocation9] sm:$0xff]
    %v238 = vld [vmem:[#allocation9 + $0x8] sm:$0xff]
    %v239 = vld [vmem:[#allocation9 + $0x10] sm:$0xff]
    %v240 = vld [vmem:[#allocation9 + $0x18] sm:$0xff]
    %v241 = vld [vmem:[#allocation9 + $0x20] sm:$0xff]
    %v242 = vld [vmem:[#allocation9 + $0x28] sm:$0xff]
    %v243 = vld [vmem:[#allocation9 + $0x30] sm:$0xff]
    %v244 = vld [vmem:[#allocation9 + $0x38] sm:$0xff]
    %v245 = vld [vmem:[#allocation9 + $0x40] sm:$0xff]
    %v246 = vld [vmem:[#allocation9 + $0x48] sm:$0xff]
    %v247 = vld [vmem:[#allocation9 + $0x50] sm:$0xff]
    %v248 = vld [vmem:[#allocation9 + $0x58] sm:$0xff]
    %v249 = vld [vmem:[#allocation9 + $0x60] sm:$0xff]
    %v250 = vld [vmem:[#allocation9 + $0x68] sm:$0xff]
    %v251 = vld [vmem:[#allocation9 + $0x70] sm:$0xff]
    %v252 = vld [vmem:[#allocation9 + $0x78] sm:$0xff]
    %v253 = vld [vmem:[#allocation10] sm:$0xff]
    %254 = vmatpush.msra.mxu0 %v252
    %255 = vmatpush.msra.mxu0 %v251
    %256 = vmatpush.msra.mxu0 %v250
    %257 = vmatpush.msra.mxu0 %v249
    %258 = vmatpush.msra.mxu0 %v248
    %259 = vmatpush.msra.mxu0 %v247
    %260 = vmatpush.msra.mxu0 %v246
    %261 = vmatpush.msra.mxu0 %v245
    %262 = vmatpush.msra.mxu0 %v244
    %263 = vmatpush.msra.mxu0 %v243
    %264 = vmatpush.msra.mxu0 %v242
    %265 = vmatpush.msra.mxu0 %v241
    %266 = vmatpush.msra.mxu0 %v240
    %267 = vmatpush.msra.mxu0 %v239
    %268 = vmatpush.msra.mxu0 %v238
    %269 = vmatpush.msra.mxu0 %v237
    %270 = vmatmul.f32.gmra.mxu0 %v236
    %v271 = vpop.f32.mrf.mxu0
    %v272 = vadd.f32 %v253, %v271
    %273 = vdwg.mxu0
    %v274 = vmax.f32 %v272, 0.0
    %v275 = vand.u32 2147483647, %v272
    %v276 = vsub.f32 0.0, %v275
    %v277 = vmul.f32 %v276, 1.442695
    %v278 = vpow.pop %v277
    %v279 = vadd.f32 %v278, 1.0
    %v280 = vlog2.pop %v279
    %v281 = vmul.f32 %v280, 0.6931472
    %v282 = vmul.f32 -0.5, %v278
    %v283 = vadd.f32 %v282, 1.0
    %v284 = vmul.f32 %v283, %v278
    %v285 = vand.u32 2147483647, %v278
    %vm286 = vcmp.lt.f32.partialorder %v285, 0.0004427343
    %v287 = vsel %vm286, %v284, %v281
    %v288 = vadd.f32 %v274, %v287
    %v289 = vlaneseq
    %v290 = vand.u32 %v289, 127
    %vm291 = vcmp.eq.s32.totalorder %v290, 1
    %v292 = vadd.f32 %v288, 0.001
    %v293 = vsel %vm291, %v292, %v272
    %294 = vst [vmem:[%s7] sm:$0xff] %v293
    // Predicated region
    $region54: #{actor_forward.1} parent=1 // pred_check
      _
    $region55: #{actor_forward.1} parent=1 // pred_check_branch
      %296 = sbr.rel (0) target = $region57
    $region56: #{actor_forward.1} parent=1 // pred_region
      _
    $region57: #{actor_forward.1} parent=1 // pred_fallthru
      _
    // Predicated region
    $region58: #{actor_forward.1} parent=1 // pred_check
      _
    $region59: #{actor_forward.1} parent=1 // pred_check_branch
      %298 = sbr.rel (0) target = $region61
    $region60: #{actor_forward.1} parent=1 // pred_region
      _
    $region61: #{actor_forward.1} parent=1 // pred_fallthru
      _
    %299 = vsyncpa [#allocation3], 1
    %300 = vsyncpa [#allocation5], 1
    %301 = vsyncpa [#allocation8], 1
    %302 = vsyncpa [#allocation11], 1

</llo_original>
